<compile_context>
chip_gen: v6e
topology: v6e:2x2x1
jax: 0.10.0
libtpu: 0.0.40
codegen_flags: <defaults>
</compile_context>

<pallas_src>
import functools
import math

import jax
import jax.numpy as jnp
from jax.experimental import pallas as pl
from jax.experimental.pallas import tpu as pltpu

GAMMA = 24.0  # fixed, non-trainable parameter of the module


def _round_up(x: int, m: int) -> int:
    return ((x + m - 1) // m) * m


def _transe_kernel(heads_ref, rels_ref, tails_ref,
                   w_ent_ref, w_rel_ref, b_rel_ref,
                   out_ref, acc_ref, *,
                   tile_m, true_batch, needs_mask, compute_dtype):
    # h - t on the VPU, cast once to the MXU compute dtype (no-op for f32).
    diff = (heads_ref[...] - tails_ref[...]).astype(compute_dtype)
    acc_ref[...] = jnp.dot(diff, w_ent_ref[...],
                           preferred_element_type=jnp.float32)
    acc_ref[...] += jnp.dot(rels_ref[...].astype(compute_dtype),
                            w_rel_ref[...],
                            preferred_element_type=jnp.float32)

    # b_ent cancels exactly in h - t; b_rel is added post-accumulation in f32.
    score = acc_ref[...] + b_rel_ref[...]
    contrib = jnp.abs(score)
    if needs_mask:
        # Zero-padded batch rows would otherwise contribute |b_rel| each.
        row = (pl.program_id(0) * tile_m
               + jax.lax.broadcasted_iota(jnp.int32, (tile_m, 1), 0))
        contrib = jnp.where(row < true_batch, contrib, 0.0)

    # One cross-lane reduce per batch tile, written to this tile's own slot
    # (no SMEM read-modify-write across tiles -> safe under "parallel").
    out_ref[0, 0] = jnp.sum(contrib)


def prepare_transe_params(w_ent, b_ent, w_rel, b_rel, *,
                          dtype=jnp.float32, lane_pad=128):
    """One-time parameter prep (transpose + emb-lane pad + dtype cast).

    w_ent: (emb_dim, num_ent), w_rel: (emb_dim, num_rel)  -- PyTorch Linear
    layout (out_features, in_features).  b_ent cancels exactly in h - t and is
    dropped.  emb_dim is zero-padded to a multiple of 128 (lane-dense output;
    zero lanes contribute nothing to the L1).  The contraction dims are left
    unpadded so the activations never need a per-call pad/cast.
    """
    del b_ent  # cancels exactly in h - t
    emb_dim = w_ent.shape[0]
    ep = _round_up(emb_dim, lane_pad)
    pad_e = ep - emb_dim
    w_ent_t = jnp.pad(w_ent.T, ((0, 0), (0, pad_e))).astype(dtype)   # (num_ent, ep)
    w_rel_t = jnp.pad(w_rel.T, ((0, 0), (0, pad_e))).astype(dtype)   # (num_rel, ep)
    b_rel_p = jnp.pad(b_rel, (0, pad_e)).reshape(1, ep).astype(jnp.float32)
    return w_ent_t, w_rel_t, b_rel_p


def transe_forward(heads, rels, tails, params, *, tm=1024):
    """score = gamma - || emb_ent(heads) + emb_rel(rels) - emb_ent(tails) ||_1"""
    w_ent_t, w_rel_t, b_rel_p = params
    b, num_ent = heads.shape
    num_rel = rels.shape[1]
    ep = w_ent_t.shape[1]
    compute_dtype = w_ent_t.dtype
    act_itemsize = heads.dtype.itemsize

    # bf16 packs two rows per sublane -> round the batch tile to 16 rows.
    sub = 16 if compute_dtype == jnp.bfloat16 else 8
    tm_eff = min(_round_up(tm, sub), _round_up(b, sub))

    # ---- explicit VMEM budget (safe on v5e/v6e 128 MiB and v7x 64 MiB) ----
    w_bytes = (w_ent_t.size * w_ent_t.dtype.itemsize
               + w_rel_t.size * w_rel_t.dtype.itemsize
               + b_rel_p.size * b_rel_p.dtype.itemsize)

    def vmem_bytes(t):
        act = 2 * t * (2 * num_ent + num_rel) * act_itemsize  # dbl-buffered h,t,r tiles
        acc = t * ep * 4                                       # f32 accumulator scratch
        return 2 * w_bytes + act + acc                         # weights x2 pipeline bufs

    vmem_cap = 40 << 20
    while vmem_bytes(tm_eff) > vmem_cap and tm_eff > sub:
        tm_eff = max(sub, _round_up(tm_eff // 2, sub))
    if vmem_bytes(tm_eff) > vmem_cap:
        # TODO(synk): for entity vocabularies whose W_ent^T does not fit VMEM,
        # stream it over a contraction grid axis (pl.Buffered(3)) instead of
        # keeping it resident.
        raise NotImplementedError("weights too large for VMEM-resident kernel")

    bp = _round_up(b, tm_eff)
    if bp != b:  # only the batch dim is ever padded, and only when needed
        heads = jnp.pad(heads, ((0, bp - b), (0, 0)))
        tails = jnp.pad(tails, ((0, bp - b), (0, 0)))
        rels = jnp.pad(rels, ((0, bp - b), (0, 0)))
    nbt = bp // tm_eff

    kernel = functools.partial(
        _transe_kernel,
        tile_m=tm_eff, true_batch=b, needs_mask=(bp != b),
        compute_dtype=compute_dtype)

    partials = pl.pallas_call(
        kernel,
        out_shape=jax.ShapeDtypeStruct((nbt, 1), jnp.float32),
        grid_spec=pltpu.PrefetchScalarGridSpec(
            num_scalar_prefetch=0,
            grid=(nbt,),
            in_specs=[
                pl.BlockSpec((tm_eff, num_ent), lambda i: (i, 0)),  # heads
                pl.BlockSpec((tm_eff, num_rel), lambda i: (i, 0)),  # rels
                pl.BlockSpec((tm_eff, num_ent), lambda i: (i, 0)),  # tails
                pl.BlockSpec((num_ent, ep), lambda i: (0, 0)),      # W_ent^T (resident)
                pl.BlockSpec((num_rel, ep), lambda i: (0, 0)),      # W_rel^T (resident)
                pl.BlockSpec((1, ep), lambda i: (0, 0)),            # b_rel   (resident)
            ],
            out_specs=pl.BlockSpec((1, 1), lambda i: (i, 0),
                                   memory_space=pltpu.SMEM),
            scratch_shapes=[pltpu.VMEM((tm_eff, ep), jnp.float32)],
        ),
        compiler_params=pltpu.CompilerParams(
            # Per-tile partial outputs + no carried state -> batch axis is
            # truly parallel (uses both v7x TensorCores; no-op on v5e/v6e).
            dimension_semantics=("parallel",),
            vmem_limit_bytes=int(min(48 << 20,
                                     max(32 << 20,
                                         vmem_bytes(tm_eff) * 5 // 4 + (1 << 20)))),
        ),
    )(heads, rels, tails, w_ent_t, w_rel_t, b_rel_p)

    return GAMMA - jnp.sum(partials)


def xavier_normal(key, shape):
    # shape = (out_features, in_features)
    fan_out, fan_in = shape
    std = math.sqrt(2.0 / (fan_in + fan_out))
    return std * jax.random.normal(key, shape, dtype=jnp.float32)


def linear_bias_init(key, in_features, out_features):
    bound = 1.0 / math.sqrt(in_features)
    return jax.random.uniform(key, (out_features,), dtype=jnp.float32,
                              minval=-bound, maxval=bound)


if __name__ == "__main__":
    num_ent, num_rel, emb_dim, batch = 32, 16, 32, 8

    key = jax.random.PRNGKey(0)
    k_we, k_be, k_wr, k_br, k_h, k_r, k_t = jax.random.split(key, 7)

    # Deterministic parameter init mirroring nn.Linear + xavier_normal_.
    w_ent = xavier_normal(k_we, (emb_dim, num_ent))
    b_ent = linear_bias_init(k_be, num_ent, emb_dim)
    w_rel = xavier_normal(k_wr, (emb_dim, num_rel))
    b_rel = linear_bias_init(k_br, num_rel, emb_dim)

    # Example inputs (dense feature vectors over entities / relations).
    heads = jax.random.normal(k_h, (batch, num_ent), dtype=jnp.float32)
    rels = jax.random.normal(k_r, (batch, num_rel), dtype=jnp.float32)
    tails = jax.random.normal(k_t, (batch, num_ent), dtype=jnp.float32)

    fwd = jax.jit(transe_forward, static_argnames=("tm",))

    def ref_score(h_in, r_in, t_in):
        h = h_in @ w_ent.T + b_ent
        r = r_in @ w_rel.T + b_rel
        t = t_in @ w_ent.T + b_ent
        return GAMMA - jnp.sum(jnp.abs(h + r - t))

    # ---- f32 path: matches the PyTorch forward semantics -------------------
    params32 = prepare_transe_params(w_ent, b_ent, w_rel, b_rel,
                                     dtype=jnp.float32)
    score32 = fwd(heads, rels, tails, params32)
    jax.block_until_ready(score32)
    ref32 = ref_score(heads, rels, tails)
    assert jnp.allclose(score32, ref32, rtol=5e-4, atol=5e-3), (score32, ref32)

    # ---- multi-tile + batch-padding (row-mask) path -------------------------
    b2 = 13
    h2 = jax.random.normal(jax.random.PRNGKey(1), (b2, num_ent), jnp.float32)
    r2 = jax.random.normal(jax.random.PRNGKey(2), (b2, num_rel), jnp.float32)
    t2 = jax.random.normal(jax.random.PRNGKey(3), (b2, num_ent), jnp.float32)
    score32b = fwd(h2, r2, t2, params32, tm=8)   # 2 batch tiles, masked last tile
    jax.block_until_ready(score32b)
    ref32b = ref_score(h2, r2, t2)
    assert jnp.allclose(score32b, ref32b, rtol=5e-4, atol=5e-3), (score32b, ref32b)

    # ---- bf16 weight path: halves resident-weight bytes; f32 accumulation ---
    params16 = prepare_transe_params(w_ent, b_ent, w_rel, b_rel,
                                     dtype=jnp.bfloat16)
    score16 = fwd(heads, rels, tails, params16)
    jax.block_until_ready(score16)
    ref16 = GAMMA - jnp.sum(jnp.abs(
        jnp.dot((heads - tails).astype(jnp.bfloat16), params16[0],
                preferred_element_type=jnp.float32)
        + jnp.dot(rels.astype(jnp.bfloat16), params16[1],
                  preferred_element_type=jnp.float32)
        + params16[2]))
    # bf16 rounding differs from the f32 PyTorch forward; tolerance documents it.
    assert jnp.allclose(score16, ref16, rtol=5e-3, atol=0.25), (score16, ref16)
    assert jnp.allclose(score16, ref32, rtol=2e-2, atol=1.0), (score16, ref32)

    print("KERNEL_OK")
</pallas_src>

<mosaic_0001>
module attributes {stable_mosaic.version = 11 : i64} {
  func.func @_transe_kernel(%arg0: i32, %arg1: memref<8x32xf32, #tpu.memory_space<vmem>>, %arg2: memref<8x16xf32, #tpu.memory_space<vmem>>, %arg3: memref<8x32xf32, #tpu.memory_space<vmem>>, %arg4: memref<32x128xf32, #tpu.memory_space<vmem>>, %arg5: memref<16x128xf32, #tpu.memory_space<vmem>>, %arg6: memref<1x128xf32, #tpu.memory_space<vmem>>, %arg7: memref<1x1xf32, #tpu.memory_space<smem>>, %arg8: memref<8x128xf32, #tpu.memory_space<vmem>>) attributes {dimension_semantics = [#tpu.dimension_semantics<parallel>], iteration_bounds = array<i64: 1>, scalar_prefetch = 0 : i64, scratch_operands = 1 : i64, tpu.core_type = #tpu.core_type<tc>, window_params = [{transform_indices = @transform_0, window_bounds = array<i64: 8, 32>}, {transform_indices = @transform_1, window_bounds = array<i64: 8, 16>}, {transform_indices = @transform_2, window_bounds = array<i64: 8, 32>}, {pipeline_mode = #tpu.pipeline_mode<synchronous>, transform_indices = @transform_3, window_bounds = array<i64: 32, 128>}, {pipeline_mode = #tpu.pipeline_mode<synchronous>, transform_indices = @transform_4, window_bounds = array<i64: 16, 128>}, {pipeline_mode = #tpu.pipeline_mode<synchronous>, transform_indices = @transform_5, window_bounds = array<i64: 1, 128>}, {transform_indices = @transform_6, window_bounds = array<i64: 1, 1>}]} {
    %c0 = arith.constant 0 : index
    %c0_0 = arith.constant 0 : index
    %0 = vector.load %arg1[%c0, %c0_0] : memref<8x32xf32, #tpu.memory_space<vmem>>, vector<8x32xf32>
    %c0_1 = arith.constant 0 : index
    %c0_2 = arith.constant 0 : index
    %1 = vector.load %arg3[%c0_1, %c0_2] : memref<8x32xf32, #tpu.memory_space<vmem>>, vector<8x32xf32>
    %2 = arith.subf %0, %1 : vector<8x32xf32>
    %c0_3 = arith.constant 0 : index
    %c0_4 = arith.constant 0 : index
    %3 = vector.load %arg4[%c0_3, %c0_4] : memref<32x128xf32, #tpu.memory_space<vmem>>, vector<32x128xf32>
    %cst = arith.constant dense<0.000000e+00> : vector<8x128xf32>
    %4 = tpu.matmul %2, %3, %cst {dimension_numbers = #tpu.dot_dimension_numbers<[1], [0], [0], [1], [0, 0, 1, 1], [], []>} : vector<8x32xf32>, vector<32x128xf32>, vector<8x128xf32> -> vector<8x128xf32>
    %c0_5 = arith.constant 0 : index
    %c0_6 = arith.constant 0 : index
    %5 = vector.load %arg8[%c0_5, %c0_6] : memref<8x128xf32, #tpu.memory_space<vmem>>, vector<8x128xf32>
    tpu.vector_store %arg8[%c0_5, %c0_6], %4 {strides = array<i32>} : memref<8x128xf32, #tpu.memory_space<vmem>>, vector<8x128xf32>,
    %c0_7 = arith.constant 0 : index
    %c0_8 = arith.constant 0 : index
    %6 = vector.load %arg8[%c0_7, %c0_8] : memref<8x128xf32, #tpu.memory_space<vmem>>, vector<8x128xf32>
    %c0_9 = arith.constant 0 : index
    %c0_10 = arith.constant 0 : index
    %7 = vector.load %arg2[%c0_9, %c0_10] : memref<8x16xf32, #tpu.memory_space<vmem>>, vector<8x16xf32>
    %c0_11 = arith.constant 0 : index
    %c0_12 = arith.constant 0 : index
    %8 = vector.load %arg5[%c0_11, %c0_12] : memref<16x128xf32, #tpu.memory_space<vmem>>, vector<16x128xf32>
    %cst_13 = arith.constant dense<0.000000e+00> : vector<8x128xf32>
    %9 = tpu.matmul %7, %8, %cst_13 {dimension_numbers = #tpu.dot_dimension_numbers<[1], [0], [0], [1], [0, 0, 1, 1], [], []>} : vector<8x16xf32>, vector<16x128xf32>, vector<8x128xf32> -> vector<8x128xf32>
    %10 = arith.addf %6, %9 : vector<8x128xf32>
    %c0_14 = arith.constant 0 : index
    %c0_15 = arith.constant 0 : index
    %11 = vector.load %arg8[%c0_14, %c0_15] : memref<8x128xf32, #tpu.memory_space<vmem>>, vector<8x128xf32>
    tpu.vector_store %arg8[%c0_14, %c0_15], %10 {strides = array<i32>} : memref<8x128xf32, #tpu.memory_space<vmem>>, vector<8x128xf32>,
    %c0_16 = arith.constant 0 : index
    %c0_17 = arith.constant 0 : index
    %12 = vector.load %arg8[%c0_16, %c0_17] : memref<8x128xf32, #tpu.memory_space<vmem>>, vector<8x128xf32>
    %c0_18 = arith.constant 0 : index
    %c0_19 = arith.constant 0 : index
    %13 = vector.load %arg6[%c0_18, %c0_19] : memref<1x128xf32, #tpu.memory_space<vmem>>, vector<1x128xf32>
    %14 = vector.broadcast %13 : vector<1x128xf32> to vector<8x128xf32>
    %15 = arith.addf %12, %14 : vector<8x128xf32>
    %16 = math.absf %15 : vector<8x128xf32>
    %17 = vector.shape_cast %16 : vector<8x128xf32> to vector<1x8x128xf32>
    %cst_20 = arith.constant dense<0.000000e+00> : vector<1xf32>
    %18 = vector.multi_reduction <add>, %17, %cst_20 [1, 2] : vector<1x8x128xf32> to vector<1xf32>
    %19 = vector.shape_cast %18 : vector<1xf32> to vector<1x1x1xf32>
    %20 = vector.extract %19[0, 0, 0] : f32 from vector<1x1x1xf32>
    %c0_21 = arith.constant 0 : index
    %c0_22 = arith.constant 0 : index
    %21 = memref.load %arg7[%c0_21, %c0_22] : memref<1x1xf32, #tpu.memory_space<smem>>
    memref.store %20, %arg7[%c0_21, %c0_22] : memref<1x1xf32, #tpu.memory_space<smem>>
    return
  }
  func.func @transform_0(%arg0: i32) -> (i32, i32) {
    %c0_i32 = arith.constant 0 : i32
    %c0_i32_0 = arith.constant 0 : i32
    return %arg0, %c0_i32 : i32, i32
  }
  func.func @transform_1(%arg0: i32) -> (i32, i32) {
    %c0_i32 = arith.constant 0 : i32
    %c0_i32_0 = arith.constant 0 : i32
    return %arg0, %c0_i32 : i32, i32
  }
  func.func @transform_2(%arg0: i32) -> (i32, i32) {
    %c0_i32 = arith.constant 0 : i32
    %c0_i32_0 = arith.constant 0 : i32
    return %arg0, %c0_i32 : i32, i32
  }
  func.func @transform_3(%arg0: i32) -> (i32, i32) {
    %c0_i32 = arith.constant 0 : i32
    %c0_i32_0 = arith.constant 0 : i32
    %c0_i32_1 = arith.constant 0 : i32
    return %c0_i32, %c0_i32_0 : i32, i32
  }
  func.func @transform_4(%arg0: i32) -> (i32, i32) {
    %c0_i32 = arith.constant 0 : i32
    %c0_i32_0 = arith.constant 0 : i32
    %c0_i32_1 = arith.constant 0 : i32
    return %c0_i32, %c0_i32_0 : i32, i32
  }
  func.func @transform_5(%arg0: i32) -> (i32, i32) {
    %c0_i32 = arith.constant 0 : i32
    %c0_i32_0 = arith.constant 0 : i32
    %c0_i32_1 = arith.constant 0 : i32
    return %c0_i32, %c0_i32_0 : i32, i32
  }
  func.func @transform_6(%arg0: i32) -> (i32, i32) {
    %c0_i32 = arith.constant 0 : i32
    %c0_i32_0 = arith.constant 0 : i32
    return %arg0, %c0_i32 : i32, i32
  }
}

</mosaic_0001>

<llo_original>
// kernel: transe_forward.1
$region0: #{transe_forward.1}
  #allocation0 [shape = 'u32[]', space=smem, size = 0x4, offset = 0x4, fixed_abs, tag = 'smem constant byte address 0x4 - core index']
  #allocation1 [shape = 'u32[144,128]{1,0:T(1,128)}', space=vmem, size = 0x12000, scoped, tag = 'internal scratch']
  #allocation2 [shape = 'f32[8,128]{1,0:T(8,128)}', space=vmem, size = 0x1000, scoped, tag = 'scratch operand']
  %s0 = inlined_call_operand.hbm [shape: f32[8,32], index: 0, kind: input, shape index: {}]
  %s1 = inlined_call_operand.hbm [shape: f32[8,16], index: 1, kind: input, shape index: {}]
  %s2 = inlined_call_operand.hbm [shape: f32[8,32], index: 2, kind: input, shape index: {}]
  %s3 = inlined_call_operand.hbm [shape: f32[32,128], index: 3, kind: input, shape index: {}]
  %s4 = inlined_call_operand.hbm [shape: f32[16,128], index: 4, kind: input, shape index: {}]
  %s5 = inlined_call_operand.vmem [shape: f32[1,128], index: 5, kind: input, shape index: {}]
  %s6 = inlined_call_operand.hbm [shape: f32[1,1], index: 6, kind: output, shape index: {}]
  %s7 = sld [smem:[#allocation0]]
  $region54: #{transe_forward.1} parent=0
    _
  %s9 = ssub.s32 1, %s7
  %s10 = scalar_select 0, %s9, %s7
  $region1: #{transe_forward.1} parent=0
    #allocation3 [shape = 'u8[4096]{0}', space=vmem, size = 0x1000, scoped, tag = 'input window, operand 0, single buffered']
    #allocation4 [shape = 's32[1]{0}', space=sflag, size = 0x4, scoped, tag = 'scoped memory for transe_forward.1']
    #allocation5 [shape = 's32[1]{0}', space=sflag, size = 0x4, scoped, tag = 'scoped memory for transe_forward.1']
    #allocation6 [shape = 'u8[4096]{0}', space=vmem, size = 0x1000, scoped, tag = 'input window, operand 1, single buffered']
    #allocation7 [shape = 's32[1]{0}', space=sflag, size = 0x4, scoped, tag = 'scoped memory for transe_forward.1']
    #allocation8 [shape = 'u8[4096]{0}', space=vmem, size = 0x1000, scoped, tag = 'input window, operand 2, single buffered']
    #allocation9 [shape = 'u8[16384]{0}', space=vmem, size = 0x4000, scoped, tag = 'input window, operand 3, single buffered']
    #allocation10 [shape = 's32[1]{0}', space=sflag, size = 0x4, scoped, tag = 'scoped memory for transe_forward.1']
    #allocation11 [shape = 'u8[8192]{0}', space=vmem, size = 0x2000, scoped, tag = 'input window, operand 4, single buffered']
    #allocation12 [shape = 'u8[512]{0}', space=smem, size = 0x200, scoped, tag = 'output window, operand 0, single buffered']
    %11 = vsyncpa [#allocation4], 0
    %12 = vsyncpa [#allocation7], 0
    %13 = vsyncpa [#allocation10], 0
    %14 = vsyncpa [#allocation5], 0
    // Predicated region
    $region2: #{transe_forward.1} parent=1 // pred_check
      _
    $region3: #{transe_forward.1} parent=1 // pred_check_branch
      %16 = sbr.rel (0) target = $region5
    $region4: #{transe_forward.1} parent=1 // pred_region
      %s18 = ssub.s32 128, 128
      %19 = vsyncadd [#allocation4], %s18
      %s21 = sshll.u32 [#allocation3], 4
      %s22 = int_to_ptr.vmem [resolvable:$true] %s21
      %24 = dma.hbm_to_vmem [thread:$0]  %s0, 128, %s22, [#allocation4]
    $region5: #{transe_forward.1} parent=1 // pred_fallthru
      _
    // Predicated region
    $region6: #{transe_forward.1} parent=1 // pred_check
      _
    $region7: #{transe_forward.1} parent=1 // pred_check_branch
      %26 = sbr.rel (0) target = $region9
    $region8: #{transe_forward.1} parent=1 // pred_region
      %s28 = ssub.s32 128, 128
      %29 = vsyncadd [#allocation7], %s28
      %s31 = sshll.u32 [#allocation6], 4
      %s32 = int_to_ptr.vmem [resolvable:$true] %s31
      %34 = dma.hbm_to_vmem [thread:$0]  %s1, 128, %s32, [#allocation7]
    $region9: #{transe_forward.1} parent=1 // pred_fallthru
      _
    // Predicated region
    $region10: #{transe_forward.1} parent=1 // pred_check
      _
    $region11: #{transe_forward.1} parent=1 // pred_check_branch
      %36 = sbr.rel (0) target = $region13
    $region12: #{transe_forward.1} parent=1 // pred_region
      %s38 = ssub.s32 128, 128
      %39 = vsyncadd [#allocation7], %s38
      %s41 = sshll.u32 [#allocation8], 4
      %s42 = int_to_ptr.vmem [resolvable:$true] %s41
      %44 = dma.hbm_to_vmem [thread:$0]  %s2, 128, %s42, [#allocation7]
    $region13: #{transe_forward.1} parent=1 // pred_fallthru
      _
    // Predicated region
    $region14: #{transe_forward.1} parent=1 // pred_check
      _
    $region15: #{transe_forward.1} parent=1 // pred_check_branch
      %46 = sbr.rel (0) target = $region17
    $region16: #{transe_forward.1} parent=1 // pred_region
      %s48 = ssub.s32 512, 512
      %49 = vsyncadd [#allocation10], %s48
      %s50 = sshll.u32 [#allocation9], 4
      %s51 = int_to_ptr.vmem [resolvable:$true] %s50
      %56 = dma.hbm_to_vmem [thread:$0]  %s3, 512, %s51, [#allocation10], 128, 128, 8
    $region17: #{transe_forward.1} parent=1 // pred_fallthru
      _
    // Predicated region
    $region18: #{transe_forward.1} parent=1 // pred_check
      _
    $region19: #{transe_forward.1} parent=1 // pred_check_branch
      %58 = sbr.rel (0) target = $region21
    $region20: #{transe_forward.1} parent=1 // pred_region
      %s60 = ssub.s32 256, 256
      %61 = vsyncadd [#allocation10], %s60
      %s62 = sshll.u32 [#allocation11], 4
      %s63 = int_to_ptr.vmem [resolvable:$true] %s62
      %68 = dma.hbm_to_vmem [thread:$0]  %s4, 256, %s63, [#allocation10], 128, 128, 8
    $region21: #{transe_forward.1} parent=1 // pred_fallthru
      _
    // Predicated region
    $region22: #{transe_forward.1} parent=1 // pred_check
      _
    $region23: #{transe_forward.1} parent=1 // pred_check_branch
      %70 = sbr.rel (0) target = $region25
    $region24: #{transe_forward.1} parent=1 // pred_region
      _
    $region25: #{transe_forward.1} parent=1 // pred_fallthru
      _
    // Predicated region
    $region26: #{transe_forward.1} parent=1 // pred_check
      _
    $region27: #{transe_forward.1} parent=1 // pred_check_branch
      %72 = sbr.rel (0) target = $region29
    $region28: #{transe_forward.1} parent=1 // pred_region
      %73 = dma.done [#allocation4], 128
    $region29: #{transe_forward.1} parent=1 // pred_fallthru
      _
    // Predicated region
    $region30: #{transe_forward.1} parent=1 // pred_check
      _
    $region31: #{transe_forward.1} parent=1 // pred_check_branch
      %75 = sbr.rel (0) target = $region33
    $region32: #{transe_forward.1} parent=1 // pred_region
      %76 = dma.done [#allocation7], 128
    $region33: #{transe_forward.1} parent=1 // pred_fallthru
      _
    // Predicated region
    $region34: #{transe_forward.1} parent=1 // pred_check
      _
    $region35: #{transe_forward.1} parent=1 // pred_check_branch
      %78 = sbr.rel (0) target = $region37
    $region36: #{transe_forward.1} parent=1 // pred_region
      %79 = dma.done [#allocation7], 128
    $region37: #{transe_forward.1} parent=1 // pred_fallthru
      _
    // Predicated region
    $region38: #{transe_forward.1} parent=1 // pred_check
      _
    $region39: #{transe_forward.1} parent=1 // pred_check_branch
      %81 = sbr.rel (0) target = $region41
    $region40: #{transe_forward.1} parent=1 // pred_region
      %82 = dma.done [#allocation10], 512
    $region41: #{transe_forward.1} parent=1 // pred_fallthru
      _
    // Predicated region
    $region42: #{transe_forward.1} parent=1 // pred_check
      _
    $region43: #{transe_forward.1} parent=1 // pred_check_branch
      %84 = sbr.rel (0) target = $region45
    $region44: #{transe_forward.1} parent=1 // pred_region
      %85 = dma.done [#allocation10], 256
    $region45: #{transe_forward.1} parent=1 // pred_fallthru
      _
    %v86 = vld [vmem:[#allocation3] sm:$0xff]
    %v87 = vld [vmem:[#allocation8] sm:$0xff]
    %v88 = vsub.f32 %v86, %v87
    %v89 = vld [vmem:[#allocation9] sm:$0xff]
    %v90 = vld [vmem:[#allocation9 + $0x8] sm:$0xff]
    %v91 = vld [vmem:[#allocation9 + $0x10] sm:$0xff]
    %v92 = vld [vmem:[#allocation9 + $0x18] sm:$0xff]
    %vm93 = vcmask 261120
    %v95 = vsel %vm93, %v88, 0
    %97 = vmatprep.subr.mxu0 0.0
    %98 = vmatpush1.msra.mxu0 0.0
    %99 = vmatprep.subr.mxu0 0.0
    %100 = vmatpush1.msra.mxu0 0.0
    %101 = vmatprep.subr.mxu0 0.0
    %102 = vmatpush1.msra.mxu0 0.0
    %103 = vmatprep.subr.mxu0 0.0
    %104 = vmatpush1.msra.mxu0 0.0
    %105 = vmatprep.subr.mxu0 0.0
    %106 = vmatpush1.msra.mxu0 0.0
    %107 = vmatprep.subr.mxu0 0.0
    %108 = vmatpush1.msra.mxu0 0.0
    %109 = vmatprep.subr.mxu0 0.0
    %110 = vmatpush1.msra.mxu0 0.0
    %111 = vmatprep.subr.mxu0 0.0
    %112 = vmatpush1.msra.mxu0 0.0
    %113 = vmatprep.subr.mxu0 0.0
    %114 = vmatpush1.msra.mxu0 0.0
    %115 = vmatprep.subr.mxu0 0.0
    %116 = vmatpush1.msra.mxu0 0.0
    %117 = vmatprep.subr.mxu0 0.0
    %118 = vmatpush1.msra.mxu0 0.0
    %119 = vmatprep.subr.mxu0 0.0
    %120 = vmatpush1.msra.mxu0 0.0
    %121 = vmatprep.subr.mxu0 0.0
    %122 = vmatpush1.msra.mxu0 %v92
    %123 = vmatprep.subr.mxu0 0.0
    %124 = vmatpush1.msra.mxu0 %v91
    %125 = vmatprep.subr.mxu0 0.0
    %126 = vmatpush1.msra.mxu0 %v90
    %127 = vmatprep.subr.mxu0 0.0
    %128 = vmatpush1.msra.mxu0 %v89
    %129 = vmatprep.subr.mxu0 0.0
    %130 = vmatpush2.msra.mxu0 0.0
    %131 = vmatprep.subr.mxu0 0.0
    %132 = vmatpush2.msra.mxu0 0.0
    %133 = vmatprep.subr.mxu0 0.0
    %134 = vmatpush2.msra.mxu0 0.0
    %135 = vmatprep.subr.mxu0 0.0
    %136 = vmatpush2.msra.mxu0 0.0
    %137 = vmatprep.subr.mxu0 0.0
    %138 = vmatpush2.msra.mxu0 0.0
    %139 = vmatprep.subr.mxu0 0.0
    %140 = vmatpush2.msra.mxu0 0.0
    %141 = vmatprep.subr.mxu0 0.0
    %142 = vmatpush2.msra.mxu0 0.0
    %143 = vmatprep.subr.mxu0 0.0
    %144 = vmatpush2.msra.mxu0 0.0
    %145 = vmatprep.subr.mxu0 0.0
    %146 = vmatpush2.msra.mxu0 0.0
    %147 = vmatprep.subr.mxu0 0.0
    %148 = vmatpush2.msra.mxu0 0.0
    %149 = vmatprep.subr.mxu0 0.0
    %150 = vmatpush2.msra.mxu0 0.0
    %151 = vmatprep.subr.mxu0 0.0
    %152 = vmatpush2.msra.mxu0 0.0
    %153 = vmatprep.subr.mxu0 0.0
    %154 = vmatpush2.msra.mxu0 0.0
    %155 = vmatprep.subr.mxu0 0.0
    %156 = vmatpush2.msra.mxu0 0.0
    %157 = vmatprep.subr.mxu0 0.0
    %158 = vmatpush2.msra.mxu0 0.0
    %159 = vmatprep.subr.mxu0 0.0
    %160 = vmatpush2.msra.mxu0 0.0
    %161 = vmatprep.mubr.f32.mxu0 0.0
    %162 = vmatmul.mubr.f32.gmra.mxu0 %v95
    %v163 = vpop.f32.mrf.mxu0
    %v164 = vadd.f32 0.0, %v163
    %v165 = vpop.f32.mrf.mxu0
    %166 = vdwg.mxu0
    %167 = vst [vmem:[#allocation2] sm:$0xff] %v164
    %v168 = vld [vmem:[#allocation2] sm:$0xff]
    %v169 = vld [vmem:[#allocation6] sm:$0xff]
    %v170 = vld [vmem:[#allocation11] sm:$0xff]
    %v171 = vld [vmem:[#allocation11 + $0x8] sm:$0xff]
    %vm172 = vcmask 130048
    %v174 = vsel %vm172, %v169, 0
    %176 = vmatprep.subr.mxu0 0.0
    %177 = vmatpush1.msra.mxu0 0.0
    %178 = vmatprep.subr.mxu0 0.0
    %179 = vmatpush1.msra.mxu0 0.0
    %180 = vmatprep.subr.mxu0 0.0
    %181 = vmatpush1.msra.mxu0 0.0
    %182 = vmatprep.subr.mxu0 0.0
    %183 = vmatpush1.msra.mxu0 0.0
    %184 = vmatprep.subr.mxu0 0.0
    %185 = vmatpush1.msra.mxu0 0.0
    %186 = vmatprep.subr.mxu0 0.0
    %187 = vmatpush1.msra.mxu0 0.0
    %188 = vmatprep.subr.mxu0 0.0
    %189 = vmatpush1.msra.mxu0 0.0
    %190 = vmatprep.subr.mxu0 0.0
    %191 = vmatpush1.msra.mxu0 0.0
    %192 = vmatprep.subr.mxu0 0.0
    %193 = vmatpush1.msra.mxu0 0.0
    %194 = vmatprep.subr.mxu0 0.0
    %195 = vmatpush1.msra.mxu0 0.0
    %196 = vmatprep.subr.mxu0 0.0
    %197 = vmatpush1.msra.mxu0 0.0
    %198 = vmatprep.subr.mxu0 0.0
    %199 = vmatpush1.msra.mxu0 0.0
    %200 = vmatprep.subr.mxu0 0.0
    %201 = vmatpush1.msra.mxu0 0.0
    %202 = vmatprep.subr.mxu0 0.0
    %203 = vmatpush1.msra.mxu0 0.0
    %204 = vmatprep.subr.mxu0 0.0
    %205 = vmatpush1.msra.mxu0 %v171
    %206 = vmatprep.subr.mxu0 0.0
    %207 = vmatpush1.msra.mxu0 %v170
    %208 = vmatprep.subr.mxu0 0.0
    %209 = vmatpush2.msra.mxu0 0.0
    %210 = vmatprep.subr.mxu0 0.0
    %211 = vmatpush2.msra.mxu0 0.0
    %212 = vmatprep.subr.mxu0 0.0
    %213 = vmatpush2.msra.mxu0 0.0
    %214 = vmatprep.subr.mxu0 0.0
    %215 = vmatpush2.msra.mxu0 0.0
    %216 = vmatprep.subr.mxu0 0.0
    %217 = vmatpush2.msra.mxu0 0.0
    %218 = vmatprep.subr.mxu0 0.0
    %219 = vmatpush2.msra.mxu0 0.0
    %220 = vmatprep.subr.mxu0 0.0
    %221 = vmatpush2.msra.mxu0 0.0
    %222 = vmatprep.subr.mxu0 0.0
    %223 = vmatpush2.msra.mxu0 0.0
    %224 = vmatprep.subr.mxu0 0.0
    %225 = vmatpush2.msra.mxu0 0.0
    %226 = vmatprep.subr.mxu0 0.0
    %227 = vmatpush2.msra.mxu0 0.0
    %228 = vmatprep.subr.mxu0 0.0
    %229 = vmatpush2.msra.mxu0 0.0
    %230 = vmatprep.subr.mxu0 0.0
    %231 = vmatpush2.msra.mxu0 0.0
    %232 = vmatprep.subr.mxu0 0.0
    %233 = vmatpush2.msra.mxu0 0.0
    %234 = vmatprep.subr.mxu0 0.0
    %235 = vmatpush2.msra.mxu0 0.0
    %236 = vmatprep.subr.mxu0 0.0
    %237 = vmatpush2.msra.mxu0 0.0
    %238 = vmatprep.subr.mxu0 0.0
    %239 = vmatpush2.msra.mxu0 0.0
    %240 = vmatprep.mubr.f32.mxu0 0.0
    %241 = vmatmul.mubr.f32.gmra.mxu0 %v174
    %v242 = vpop.f32.mrf.mxu0
    %v243 = vadd.f32 0.0, %v242
    %v244 = vpop.f32.mrf.mxu0
    %245 = vdwg.mxu0
    %v246 = vadd.f32 %v168, %v243
    %247 = vst [vmem:[#allocation2] sm:$0xff] %v246
    %v248 = vld [vmem:[#allocation2] sm:$0xff]
    %v249 = vld [vmem:[%s5] sm:$0x1]
    %v251 = vlaneseq
    %v252 = vshrl.u32 %v251, 7
    %v253 = vsub.s32 0, %v252
    %v254 = vrot.slane %v249, %v253
    %v256 = vadd.f32 %v248, %v254
    %v257 = vand.u32 2147483647, %v256
    %258 = vadd.xlane.f32.xlu0 %v257
    %v259 = vpop.xlane.xlu0 %258
    %v260 = vrot.slane %v259, 4
    %v261 = vadd.f32 %v259, %v260
    %v262 = vrot.slane %v261, 2
    %v263 = vadd.f32 %v261, %v262
    %v264 = vrot.slane %v263, 1
    %v265 = vadd.f32 %v263, %v264
    %s266 = vtos %v265
    %s267 = scalar_lea.smem [#allocation12], 0
    %268 = sst [smem:[%s267]] %s266
    // Predicated region
    $region46: #{transe_forward.1} parent=1 // pred_check
      _
    $region47: #{transe_forward.1} parent=1 // pred_check_branch
      %270 = sbr.rel (0) target = $region49
    $region48: #{transe_forward.1} parent=1 // pred_region
      %s272 = ssub.s32 16, 16
      %273 = vsyncadd [#allocation5], %s272
      %276 = dma.smem_to_hbm [#allocation12], 16, %s6, [#allocation5]
    $region49: #{transe_forward.1} parent=1 // pred_fallthru
      _
    // Predicated region
    $region50: #{transe_forward.1} parent=1 // pred_check
      _
    $region51: #{transe_forward.1} parent=1 // pred_check_branch
      %278 = sbr.rel (0) target = $region53
    $region52: #{transe_forward.1} parent=1 // pred_region
      %279 = dma.done [#allocation5], 16
    $region53: #{transe_forward.1} parent=1 // pred_fallthru
      _
    %280 = sfence
    %281 = vsyncpa [#allocation4], 1
    %282 = vsyncpa [#allocation7], 1
    %283 = vsyncpa [#allocation10], 1
    %284 = vsyncpa [#allocation5], 1

</llo_original>
